<compile_context>
chip_gen: v5e
topology: v5e:2x2
jax: 0.10.0
libtpu: 0.0.40
codegen_flags: <defaults>
</compile_context>

<pallas_src>
import jax
import jax.numpy as jnp
from jax.experimental import pallas as pl
from jax.experimental.pallas import tpu as pltpu

DEGREE = 3  # LucasKAN(dim, dim, 3)


def lucas_kan_kernel(x_ref, w_ref, b_ref, o_ref, basis_ref):
    # x_ref:     (1, N, TD)  block of the (B, N, D) input (D on lanes)
    # w_ref:     (N, DEGREE*N)  w[o, (k-1)*N + i] = coeffs[i, o, k]   (degrees 1..DEGREE)
    # b_ref:     (N, 1)         bias[o] = 2 * sum_i coeffs[i, o, 0]   (constant L0 term)
    # o_ref:     (1, N, TD)
    # basis_ref: (DEGREE*N, TD) VMEM scratch, basis rows written in place
    n = x_ref.shape[1]
    t = jnp.tanh(x_ref[0].astype(basis_ref.dtype))      # (N, TD), normalize to [-1, 1]

    # Lucas recurrence with scalar constants; L0 = 2 is handled by the bias and
    # never materialized as a (N, TD) tile.
    l1 = t                                               # L1 = t
    basis_ref[0:n, :] = l1
    l2 = t * t + 2.0                                     # L2 = t^2 + 2
    basis_ref[n:2 * n, :] = l2
    l_prev, l_cur = l1, l2
    for k in range(3, DEGREE + 1):                       # static unroll (DEGREE = 3)
        l_prev, l_cur = l_cur, t * l_cur + l_prev
        basis_ref[(k - 1) * n:k * n, :] = l_cur

    # Single fused MXU matmul over K = DEGREE*N, f32 accumulation + VPU bias add.
    y = jnp.dot(w_ref[...], basis_ref[...], preferred_element_type=jnp.float32)
    o_ref[0] = (y + b_ref[...]).astype(o_ref.dtype)


def spatial_kan(x, lucas_coeffs, *, max_td=8192):
    """x: (B, N, D) with N == dim; lucas_coeffs: (N, N, DEGREE+1)."""
    B, N, D = x.shape
    assert lucas_coeffs.shape == (N, N, DEGREE + 1)

    # bf16 inputs keep the basis math in bf16 (halves vreg/VMEM/MXU-operand bytes
    # on v6e/v7x); f32 inputs stay f32 (required on v5e, exact everywhere).
    compute_dtype = jnp.bfloat16 if x.dtype == jnp.bfloat16 else jnp.float32

    # Degree-0 term: L0(t) = 2 is constant -> per-output-column bias.
    bias = (2.0 * jnp.sum(lucas_coeffs[:, :, 0], axis=0)).reshape(N, 1).astype(jnp.float32)

    # Fuse degrees 1..DEGREE along the contraction axis: (N_out, DEGREE*N_in),
    # w_fused[o, (k-1)*N + i] = coeffs[i, o, k].
    w_deg = jnp.transpose(lucas_coeffs, (2, 1, 0))                    # (K, N_out, N_in)
    w_fused = jnp.concatenate(
        [w_deg[k] for k in range(1, DEGREE + 1)], axis=1).astype(compute_dtype)

    # Lane tile: multiple of 128, as large as possible (amortize per-step overhead).
    # No pad/slice pass over HBM: the grid uses cdiv and Pallas masks the partial
    # last lane block.
    d128 = max(128, ((D + 127) // 128) * 128)
    td = min(max_td, d128)
    # Keep >= 2 parallel grid steps when possible (both v7x TensorCores get work).
    while B * pl.cdiv(D, td) < 2 and td > 128:
        td = max(128, (td // 2) // 128 * 128)
    grid = (B, pl.cdiv(D, td))

    return pl.pallas_call(
        lucas_kan_kernel,
        out_shape=jax.ShapeDtypeStruct((B, N, D), x.dtype),
        grid_spec=pltpu.PrefetchScalarGridSpec(
            num_scalar_prefetch=0,
            grid=grid,
            in_specs=[
                pl.BlockSpec((1, N, td), lambda b, j: (b, 0, j)),
                # Constant index_maps -> weights / bias stay resident in VMEM.
                pl.BlockSpec((N, DEGREE * N), lambda b, j: (0, 0)),
                pl.BlockSpec((N, 1), lambda b, j: (0, 0)),
            ],
            out_specs=pl.BlockSpec((1, N, td), lambda b, j: (b, 0, j)),
            scratch_shapes=[pltpu.VMEM((DEGREE * N, td), compute_dtype)],
        ),
        compiler_params=pltpu.CompilerParams(
            dimension_semantics=("parallel", "parallel"),
            # Explicit budget: ~4 MiB actual usage at td=8192, fits v7x's 64 MiB.
            vmem_limit_bytes=32 * 1024 * 1024,
        ),
    )(x, w_fused, bias)


def spatial_kan_reference(x, lucas_coeffs):
    """Pure-JAX reference mirroring the PyTorch forward exactly."""
    B, N, D = x.shape
    xt = jnp.transpose(x, (0, 2, 1)).reshape(B * D, N)     # arr0 + reshape(-1, inputdim)
    t = jnp.tanh(xt)
    basis = [jnp.full_like(t, 2.0), t]
    for _ in range(2, DEGREE + 1):
        basis.append(t * basis[-1] + basis[-2])
    lucas = jnp.stack(basis, axis=-1)                      # (M, N, K)
    y2d = jnp.einsum("bik,iok->bo", lucas, lucas_coeffs)   # (M, N)
    return jnp.transpose(y2d.reshape(B, D, N), (0, 2, 1))  # arr1


if __name__ == "__main__":
    key = jax.random.PRNGKey(0)
    k_x, k_w = jax.random.split(key)

    B, dim, D = 2, 16, 256                 # x: (batch, n, d) with n == dim == 16
    x = jax.random.normal(k_x, (B, dim, D), dtype=jnp.float32)

    # nn.init.normal_(coeffs, mean=0, std=1/(input_dim*(degree+1)))
    std = 1.0 / (dim * (DEGREE + 1))
    lucas_coeffs = std * jax.random.normal(
        k_w, (dim, dim, DEGREE + 1), dtype=jnp.float32
    )

    out = jax.block_until_ready(spatial_kan(x, lucas_coeffs))
    ref = spatial_kan_reference(x, lucas_coeffs)

    assert out.shape == (B, dim, D)
    assert jnp.allclose(out, ref, atol=1e-5, rtol=1e-5)
    print("KERNEL_OK")
</pallas_src>

<mosaic_0001>
module attributes {stable_mosaic.version = 11 : i64} {
  func.func @lucas_kan_kernel(%arg0: i32, %arg1: i32, %arg2: memref<1x16x256xf32, #tpu.memory_space<vmem>>, %arg3: memref<16x48xf32, #tpu.memory_space<vmem>>, %arg4: memref<16x1xf32, #tpu.memory_space<vmem>>, %arg5: memref<1x16x256xf32, #tpu.memory_space<vmem>>, %arg6: memref<48x256xf32, #tpu.memory_space<vmem>>) attributes {dimension_semantics = [#tpu.dimension_semantics<parallel>, #tpu.dimension_semantics<parallel>], iteration_bounds = array<i64: 2, 1>, scalar_prefetch = 0 : i64, scratch_operands = 1 : i64, tpu.core_type = #tpu.core_type<tc>, window_params = [{transform_indices = @transform_0, window_bounds = array<i64: 1, 16, 256>}, {pipeline_mode = #tpu.pipeline_mode<synchronous>, transform_indices = @transform_1, window_bounds = array<i64: 16, 48>}, {pipeline_mode = #tpu.pipeline_mode<synchronous>, transform_indices = @transform_2, window_bounds = array<i64: 16, 1>}, {transform_indices = @transform_3, window_bounds = array<i64: 1, 16, 256>}]} {
    %c0 = arith.constant 0 : index
    %c0_0 = arith.constant 0 : index
    %c0_1 = arith.constant 0 : index
    %0 = vector.load %arg2[%c0, %c0_0, %c0_1] : memref<1x16x256xf32, #tpu.memory_space<vmem>>, vector<1x16x256xf32>
    %1 = vector.shape_cast %0 : vector<1x16x256xf32> to vector<16x256xf32>
    %2 = math.tanh %1 : vector<16x256xf32>
    %c0_2 = arith.constant 0 : index
    %c0_3 = arith.constant 0 : index
    %3 = vector.load %arg6[%c0_2, %c0_3] : memref<48x256xf32, #tpu.memory_space<vmem>>, vector<16x256xf32>
    tpu.vector_store %arg6[%c0_2, %c0_3], %2 {strides = array<i32>} : memref<48x256xf32, #tpu.memory_space<vmem>>, vector<16x256xf32>,
    %4 = arith.mulf %2, %2 : vector<16x256xf32>
    %cst = arith.constant 2.000000e+00 : f32
    %5 = vector.broadcast %cst : f32 to vector<16x256xf32>
    %6 = arith.addf %4, %5 : vector<16x256xf32>
    %c16 = arith.constant 16 : index
    %c0_4 = arith.constant 0 : index
    %7 = vector.load %arg6[%c16, %c0_4] : memref<48x256xf32, #tpu.memory_space<vmem>>, vector<16x256xf32>
    tpu.vector_store %arg6[%c16, %c0_4], %6 {strides = array<i32>} : memref<48x256xf32, #tpu.memory_space<vmem>>, vector<16x256xf32>,
    %8 = arith.mulf %2, %6 : vector<16x256xf32>
    %9 = arith.addf %8, %2 : vector<16x256xf32>
    %c32 = arith.constant 32 : index
    %c0_5 = arith.constant 0 : index
    %10 = vector.load %arg6[%c32, %c0_5] : memref<48x256xf32, #tpu.memory_space<vmem>>, vector<16x256xf32>
    tpu.vector_store %arg6[%c32, %c0_5], %9 {strides = array<i32>} : memref<48x256xf32, #tpu.memory_space<vmem>>, vector<16x256xf32>,
    %c0_6 = arith.constant 0 : index
    %c0_7 = arith.constant 0 : index
    %11 = vector.load %arg3[%c0_6, %c0_7] : memref<16x48xf32, #tpu.memory_space<vmem>>, vector<16x48xf32>
    %c0_8 = arith.constant 0 : index
    %c0_9 = arith.constant 0 : index
    %12 = vector.load %arg6[%c0_8, %c0_9] : memref<48x256xf32, #tpu.memory_space<vmem>>, vector<48x256xf32>
    %cst_10 = arith.constant dense<0.000000e+00> : vector<16x256xf32>
    %13 = tpu.matmul %11, %12, %cst_10 {dimension_numbers = #tpu.dot_dimension_numbers<[1], [0], [0], [1], [0, 0, 1, 1], [], []>} : vector<16x48xf32>, vector<48x256xf32>, vector<16x256xf32> -> vector<16x256xf32>
    %c0_11 = arith.constant 0 : index
    %c0_12 = arith.constant 0 : index
    %14 = vector.load %arg4[%c0_11, %c0_12] : memref<16x1xf32, #tpu.memory_space<vmem>>, vector<16x1xf32>
    %15 = vector.broadcast %14 : vector<16x1xf32> to vector<16x256xf32>
    %16 = arith.addf %13, %15 : vector<16x256xf32>
    %c0_13 = arith.constant 0 : index
    %c0_14 = arith.constant 0 : index
    %c0_15 = arith.constant 0 : index
    %17 = vector.load %arg5[%c0_13, %c0_14, %c0_15] : memref<1x16x256xf32, #tpu.memory_space<vmem>>, vector<1x16x256xf32>
    %18 = vector.shape_cast %17 : vector<1x16x256xf32> to vector<16x256xf32>
    %19 = vector.shape_cast %16 : vector<16x256xf32> to vector<1x16x256xf32>
    tpu.vector_store %arg5[%c0_13, %c0_14, %c0_15], %19 {strides = array<i32>} : memref<1x16x256xf32, #tpu.memory_space<vmem>>, vector<1x16x256xf32>,
    return
  }
  func.func @transform_0(%arg0: i32, %arg1: i32) -> (i32, i32, i32) {
    %c0_i32 = arith.constant 0 : i32
    %c0_i32_0 = arith.constant 0 : i32
    return %arg0, %c0_i32, %arg1 : i32, i32, i32
  }
  func.func @transform_1(%arg0: i32, %arg1: i32) -> (i32, i32) {
    %c0_i32 = arith.constant 0 : i32
    %c0_i32_0 = arith.constant 0 : i32
    %c0_i32_1 = arith.constant 0 : i32
    return %c0_i32, %c0_i32_0 : i32, i32
  }
  func.func @transform_2(%arg0: i32, %arg1: i32) -> (i32, i32) {
    %c0_i32 = arith.constant 0 : i32
    %c0_i32_0 = arith.constant 0 : i32
    %c0_i32_1 = arith.constant 0 : i32
    return %c0_i32, %c0_i32_0 : i32, i32
  }
  func.func @transform_3(%arg0: i32, %arg1: i32) -> (i32, i32, i32) {
    %c0_i32 = arith.constant 0 : i32
    %c0_i32_0 = arith.constant 0 : i32
    return %arg0, %c0_i32, %arg1 : i32, i32, i32
  }
}

</mosaic_0001>

<llo_original>
// kernel: tpu_custom_call.1
$region0: #{tpu_custom_call.1}
  #allocation0 [shape = 'u32[]', space=smem, size = 0x4, offset = 0x4, fixed_abs, tag = 'smem constant byte address 0x4 - core index']
  #allocation1 [shape = 'u32[72,128]{1,0:T(1,128)}', space=vmem, size = 0x9000, scoped, tag = 'internal scratch']
  #allocation2 [shape = 'f32[48,256]{1,0:T(8,128)}', space=vmem, size = 0xc000, scoped, tag = 'scratch operand']
  %s0 = inlined_call_operand.hbm [shape: f32[2,16,256], index: 0, kind: input, shape index: {}]
  %s1 = inlined_call_operand.vmem [shape: f32[16,48], index: 1, kind: input, shape index: {}]
  %s2 = inlined_call_operand.vmem [shape: f32[16,1], index: 2, kind: input, shape index: {}]
  %s3 = inlined_call_operand.hbm [shape: f32[2,16,256], index: 3, kind: output, shape index: {}]
  %s4 = sld [smem:[#allocation0]]
  $region49: #{tpu_custom_call.1} parent=0
    _
  %s6 = ssub.s32 1, %s4
  %s7 = scalar_select 0, %s6, %s4
  $region1: #{tpu_custom_call.1} parent=0
    #allocation3 [shape = 'u8[32768]{0}', space=vmem, size = 0x8000, scoped, tag = 'input window, operand 0']
    #allocation4 [shape = 's32[2]{0}', space=sflag, size = 0x8, scoped, tag = 'scoped memory for tpu_custom_call.1']
    #allocation5 [shape = 's32[2]{0}', space=sflag, size = 0x8, scoped, tag = 'scoped memory for tpu_custom_call.1']
    #allocation6 [shape = 'u8[32768]{0}', space=vmem, size = 0x8000, scoped, tag = 'output window, operand 0']
    %8 = vsyncpa [#allocation4], 0
    %s9 = scalar_lea.sflag [#allocation4], 1
    %10 = vsyncpa %s9, 0
    %11 = vsyncpa [#allocation5], 0
    %s12 = scalar_lea.sflag [#allocation5], 1
    %13 = vsyncpa %s12, 0
    loop: start=0, step=1, limit=4
    $region2: #{tpu_custom_call.1} parent=1 // loop_pre_header
      _
    $region3: #{tpu_custom_call.1} parent=1 // loop_header
      %s15 = sphi 0, %s19
      %p16 = scmp.ge.s32.totalorder %s15, 4
      %s22 = sphi 0, %s34
      %s23 = sphi 0, %s30
      %s24 = sphi 0, %s22
      %s25 = sphi 0, %s23
      %s26 = sphi 0, %s24
      %s27 = sphi 0, %s25
      %s39 = sphi 0, %s41
      %s42 = sphi 0, %s39
      %s43 = sphi 0, %s42
      %s59 = sphi 0, %s43
      %s63 = sphi 0, %s63
      %s65 = sphi 0, %s63
      %s66 = sphi 0, %s65
      %s80 = sphi 0, %s66
      %s84 = sphi 0, %s84
      %s86 = sphi 0, %s84
      %s87 = sphi 0, %s86
      %s101 = sphi 0, %s87
      %s109 = sphi 0, %s111
      %s112 = sphi 0, %s109
      %s113 = sphi 0, %s112
      %s129 = sphi 0, %s113
    $region4: #{tpu_custom_call.1} parent=1 // loop_header_branch
      %18 = sbr.rel (%p16) target = $region8
    $region5: #{tpu_custom_call.1} parent=1 // loop_body
      %s20 = ssub.s32 %s15, 1
      %s21 = ssub.s32 %s15, 2
      %s28 = sadd.s32 1, %s23
      %p29 = scmp.ge.s32.totalorder %s28, 1
      %s30 = scalar_select %p29, 0, %s28
      %s31 = sadd.s32 1, %s22
      %s32 = scalar_select %p29, %s31, %s22
      %p33 = scmp.ge.s32.totalorder %s32, 2
      %s34 = scalar_select %p33, 0, %s32
      %s35 = ssub.s32 %s22, %s34
      %s36 = ssub.s32 %s23, %s30
      %s37 = sor.u32 %s35, %s36
      %p38 = scmp.eq.s32.totalorder %s37, 0
      %s40 = sadd.s32 %s39, 1
      %s41 = scalar_select %p38, %s39, %s40
      %p44 = pneg %p38
      %p45 = scmp.eq.s32.totalorder %s15, 1
      %p46 = por %p44, %p45
      %p47 = scmp.ne.s32.totalorder %s39, %s42
      %p48 = scmp.eq.s32.totalorder %s15, 0
      %p49 = por %p47, %p48
      %p50 = scmp.ne.s32.totalorder %s39, %s42
      %p51 = scmp.eq.s32.totalorder %s20, 1
      %p52 = por %p50, %p51
      %p53 = scmp.ne.s32.totalorder %s42, %s43
      %p54 = scmp.eq.s32.totalorder %s20, 0
      %p55 = por %p53, %p54
      %p56 = scmp.ne.s32.totalorder %s42, %s43
      %p57 = scmp.eq.s32.totalorder %s21, 1
      %p58 = por %p56, %p57
      %p60 = scmp.ne.s32.totalorder %s43, %s59
      %p61 = scmp.eq.s32.totalorder %s21, 0
      %p62 = por %p60, %p61
      %s64 = sadd.s32 %s63, 1
      %p67 = scmp.eq.s32.totalorder %s15, 1
      %p68 = scmp.ne.s32.totalorder %s63, %s65
      %p69 = scmp.eq.s32.totalorder %s15, 0
      %p70 = por %p68, %p69
      %p71 = scmp.ne.s32.totalorder %s63, %s65
      %p72 = scmp.eq.s32.totalorder %s20, 1
      %p73 = por %p71, %p72
      %p74 = scmp.ne.s32.totalorder %s65, %s66
      %p75 = scmp.eq.s32.totalorder %s20, 0
      %p76 = por %p74, %p75
      %p77 = scmp.ne.s32.totalorder %s65, %s66
      %p78 = scmp.eq.s32.totalorder %s21, 1
      %p79 = por %p77, %p78
      %p81 = scmp.ne.s32.totalorder %s66, %s80
      %p82 = scmp.eq.s32.totalorder %s21, 0
      %p83 = por %p81, %p82
      %s85 = sadd.s32 %s84, 1
      %p88 = scmp.eq.s32.totalorder %s15, 1
      %p89 = scmp.ne.s32.totalorder %s84, %s86
      %p90 = scmp.eq.s32.totalorder %s15, 0
      %p91 = por %p89, %p90
      %p92 = scmp.ne.s32.totalorder %s84, %s86
      %p93 = scmp.eq.s32.totalorder %s20, 1
      %p94 = por %p92, %p93
      %p95 = scmp.ne.s32.totalorder %s86, %s87
      %p96 = scmp.eq.s32.totalorder %s20, 0
      %p97 = por %p95, %p96
      %p98 = scmp.ne.s32.totalorder %s86, %s87
      %p99 = scmp.eq.s32.totalorder %s21, 1
      %p100 = por %p98, %p99
      %p102 = scmp.ne.s32.totalorder %s87, %s101
      %p103 = scmp.eq.s32.totalorder %s21, 0
      %p104 = por %p102, %p103
      %s105 = ssub.s32 %s22, %s34
      %s106 = ssub.s32 %s23, %s30
      %s107 = sor.u32 %s105, %s106
      %p108 = scmp.eq.s32.totalorder %s107, 0
      %s110 = sadd.s32 %s109, 1
      %s111 = scalar_select %p108, %s109, %s110
      %p114 = pneg %p108
      %p115 = scmp.eq.s32.totalorder %s15, 1
      %p116 = por %p114, %p115
      %p117 = scmp.ne.s32.totalorder %s109, %s112
      %p118 = scmp.eq.s32.totalorder %s15, 0
      %p119 = por %p117, %p118
      %p120 = scmp.ne.s32.totalorder %s109, %s112
      %p121 = scmp.eq.s32.totalorder %s20, 1
      %p122 = por %p120, %p121
      %p123 = scmp.ne.s32.totalorder %s112, %s113
      %p124 = scmp.eq.s32.totalorder %s20, 0
      %p125 = por %p123, %p124
      %p126 = scmp.ne.s32.totalorder %s112, %s113
      %p127 = scmp.eq.s32.totalorder %s21, 1
      %p128 = por %p126, %p127
      %p130 = scmp.ne.s32.totalorder %s113, %s129
      %p131 = scmp.eq.s32.totalorder %s21, 0
      %p132 = por %p130, %p131
      %p133 = scmp.le.s32.totalorder 1, %s15
      %p134 = scmp.lt.s32.totalorder %s15, 3
      %p135 = pnand %p133, %p134
      %p136 = pneg %p135
      // Predicated region
      $region9: #{tpu_custom_call.1} parent=5 // pred_check
        _
      $region10: #{tpu_custom_call.1} parent=5 // pred_check_branch
        %138 = sbr.rel (%p135) target = $region12
      $region11: #{tpu_custom_call.1} parent=5 // pred_region
        %s139 = ssub.s32 %s15, 1
        // Predicated region
        $region13: #{tpu_custom_call.1} parent=11 // pred_check
          %p140 = pneg %p76
        $region14: #{tpu_custom_call.1} parent=11 // pred_check_branch
          %142 = sbr.rel (%p140) target = $region16
        $region15: #{tpu_custom_call.1} parent=11 // pred_region
          _
        $region16: #{tpu_custom_call.1} parent=11 // pred_fallthru
          _
        // Predicated region
        $region17: #{tpu_custom_call.1} parent=11 // pred_check
          %p143 = pneg %p97
        $region18: #{tpu_custom_call.1} parent=11 // pred_check_branch
          %145 = sbr.rel (%p143) target = $region20
        $region19: #{tpu_custom_call.1} parent=11 // pred_region
          _
        $region20: #{tpu_custom_call.1} parent=11 // pred_fallthru
          _
      $region12: #{tpu_custom_call.1} parent=5 // pred_fallthru
        _
      %p146 = scmp.lt.s32.totalorder %s15, 2
      // Predicated region
      $region21: #{tpu_custom_call.1} parent=5 // pred_check
        %p147 = pneg %p146
      $region22: #{tpu_custom_call.1} parent=5 // pred_check_branch
        %149 = sbr.rel (%p147) target = $region24
      $region23: #{tpu_custom_call.1} parent=5 // pred_region
        // Predicated region
        $region25: #{tpu_custom_call.1} parent=23 // pred_check
          %p150 = pneg %p49
        $region26: #{tpu_custom_call.1} parent=23 // pred_check_branch
          %152 = sbr.rel (%p150) target = $region28
        $region27: #{tpu_custom_call.1} parent=23 // pred_region
          %s153 = sand.u32 %s39, 1
          %s154 = scalar_lea.sflag [#allocation4], %s153
          %s155 = sand.u32 %s39, 1
          %s156 = smul.addr %s155, 32
          %s157 = scalar_lea.vmem [#allocation3], %s156
          %s158 = smul.u32 2, %s23
          %160 = vsyncadd %s154, 0
          %s161 = smul.addr %s22, 4
          %s162 = sadd.s32 %s158, %s161
          %s163 = smul.addr %s162, 8
          %s164 = scalar_lea.hbm %s0, %s163
          %s165 = sshll.u32 %s164, 4
          %s166 = int_to_ptr.hbm [resolvable:$true] %s165
          %s167 = sshll.u32 %s157, 4
          %s168 = int_to_ptr.vmem [resolvable:$true] %s167
          %173 = dma.hbm_to_vmem [thread:$0]  %s166, 512, %s168, %s154, 256, 256, 16
        $region28: #{tpu_custom_call.1} parent=23 // pred_fallthru
          _
      $region24: #{tpu_custom_call.1} parent=5 // pred_fallthru
        _
      %p174 = scmp.le.s32.totalorder 1, %s15
      %p175 = scmp.lt.s32.totalorder %s15, 3
      %p176 = pnand %p174, %p175
      %p177 = pneg %p176
      // Predicated region
      $region29: #{tpu_custom_call.1} parent=5 // pred_check
        _
      $region30: #{tpu_custom_call.1} parent=5 // pred_check_branch
        %179 = sbr.rel (%p176) target = $region32
      $region31: #{tpu_custom_call.1} parent=5 // pred_region
        %s180 = ssub.s32 %s15, 1
        %s181 = sand.u32 %s42, 1
        %s182 = scalar_lea.sflag [#allocation4], %s181
        %s183 = sand.u32 %s42, 1
        %s184 = smul.addr %s183, 32
        %s185 = scalar_lea.vmem [#allocation3], %s184
        // Predicated region
        $region33: #{tpu_custom_call.1} parent=31 // pred_check
          %p186 = pneg %p55
        $region34: #{tpu_custom_call.1} parent=31 // pred_check_branch
          %188 = sbr.rel (%p186) target = $region36
        $region35: #{tpu_custom_call.1} parent=31 // pred_region
          %190 = dma.done %s182, 512
        $region36: #{tpu_custom_call.1} parent=31 // pred_fallthru
          _
        %s191 = sand.u32 %s42, 1
        %s192 = scalar_lea.sflag [#allocation4], %s191
        %s193 = sand.u32 %s42, 1
        %s194 = smul.addr %s193, 32
        %s195 = scalar_lea.vmem [#allocation3], %s194
        %p196 = pneg %p55
        %p197 = pneg %p52
        %p198 = pneg %p76
        %p199 = pneg %p73
        %p200 = pneg %p97
        %p201 = pneg %p94
        %p202 = pneg %p125
        %p203 = pneg %p122
        %s204 = sand.u32 %s112, 1
        %s205 = scalar_lea.sflag [#allocation5], %s204
        %s206 = sand.u32 %s112, 1
        %s207 = smul.addr %s206, 32
        %s208 = scalar_lea.vmem [#allocation6], %s207
        %s209 = smul.u32 2, %s25
        %s210 = smul.u32 2, %s25
        %v211 = vld [vmem:[%s185] sm:$0xff]
        %v212 = vld [vmem:[%s185 + $0x8] sm:$0xff]
        %v213 = vld [vmem:[%s185 + $0x10] sm:$0xff]
        %v214 = vld [vmem:[%s185 + $0x18] sm:$0xff]
        %v215 = vtanh.pop %v211
        %v216 = vtanh.pop %v212
        %v217 = vtanh.pop %v213
        %v218 = vtanh.pop %v214
        %219 = vst [vmem:[#allocation2] sm:$0xff] %v215
        %220 = vst [vmem:[#allocation2 + $0x8] sm:$0xff] %v216
        %221 = vst [vmem:[#allocation2 + $0x10] sm:$0xff] %v217
        %222 = vst [vmem:[#allocation2 + $0x18] sm:$0xff] %v218
        %v223 = vmul.f32 %v215, %v215
        %v224 = vmul.f32 %v216, %v216
        %v225 = vmul.f32 %v217, %v217
        %v226 = vmul.f32 %v218, %v218
        %v227 = vadd.f32 %v223, 2.0
        %v228 = vadd.f32 %v224, 2.0
        %v229 = vadd.f32 %v225, 2.0
        %v230 = vadd.f32 %v226, 2.0
        %231 = vst [vmem:[#allocation2 + $0x20] sm:$0xff] %v227
        %232 = vst [vmem:[#allocation2 + $0x28] sm:$0xff] %v228
        %233 = vst [vmem:[#allocation2 + $0x30] sm:$0xff] %v229
        %234 = vst [vmem:[#allocation2 + $0x38] sm:$0xff] %v230
        %v235 = vmul.f32 %v215, %v227
        %v236 = vmul.f32 %v216, %v228
        %v237 = vmul.f32 %v217, %v229
        %v238 = vmul.f32 %v218, %v230
        %v239 = vadd.f32 %v235, %v215
        %v240 = vadd.f32 %v236, %v216
        %v241 = vadd.f32 %v237, %v217
        %v242 = vadd.f32 %v238, %v218
        %243 = vst [vmem:[#allocation2 + $0x40] sm:$0xff] %v239
        %244 = vst [vmem:[#allocation2 + $0x48] sm:$0xff] %v240
        %245 = vst [vmem:[#allocation2 + $0x50] sm:$0xff] %v241
        %246 = vst [vmem:[#allocation2 + $0x58] sm:$0xff] %v242
        %v247 = vld [vmem:[%s1] sm:$0xff]
        %v248 = vld [vmem:[%s1 + $0x8] sm:$0xff]
        %v249 = vld [vmem:[#allocation2] sm:$0xff]
        %v250 = vld [vmem:[#allocation2 + $0x8] sm:$0xff]
        %v251 = vld [vmem:[#allocation2 + $0x10] sm:$0xff]
        %v252 = vld [vmem:[#allocation2 + $0x18] sm:$0xff]
        %v253 = vld [vmem:[#allocation2 + $0x20] sm:$0xff]
        %v254 = vld [vmem:[#allocation2 + $0x28] sm:$0xff]
        %v255 = vld [vmem:[#allocation2 + $0x30] sm:$0xff]
        %v256 = vld [vmem:[#allocation2 + $0x38] sm:$0xff]
        %v257 = vld [vmem:[#allocation2 + $0x40] sm:$0xff]
        %v258 = vld [vmem:[#allocation2 + $0x48] sm:$0xff]
        %v259 = vld [vmem:[#allocation2 + $0x50] sm:$0xff]
        %v260 = vld [vmem:[#allocation2 + $0x58] sm:$0xff]
        %v261 = vld [vmem:[%s2] sm:$0xff]
        %v262 = vld [vmem:[%s2 + $0x8] sm:$0xff]
        %264 = vset.pattern.permute.xlu0 0
        %265 = vperm.xlu0 %264, %v261
        %v266 = vpop.permute.xlu0 %265
        %269 = vset.pattern.permute.xlu0 0
        %270 = vperm.xlu0 %269, %v262
        %v271 = vpop.permute.xlu0 %270
        %vm273 = vcmask 392192
        %v275 = vsel %vm273, %v247, 0
        %v278 = vsel %vm273, %v248, 0
        %280 = vmatpush.msra.mxu0 0.0
        %281 = vmatpush.msra.mxu0 0.0
        %282 = vmatpush.msra.mxu0 0.0
        %283 = vmatpush.msra.mxu0 0.0
        %284 = vmatpush.msra.mxu0 0.0
        %285 = vmatpush.msra.mxu0 0.0
        %286 = vmatpush.msra.mxu0 0.0
        %287 = vmatpush.msra.mxu0 0.0
        %288 = vmatpush.msra.mxu0 0.0
        %289 = vmatpush.msra.mxu0 0.0
        %290 = vmatpush.msra.mxu0 %v259
        %291 = vmatpush.msra.mxu0 %v257
        %292 = vmatpush.msra.mxu0 %v255
        %293 = vmatpush.msra.mxu0 %v253
        %294 = vmatpush.msra.mxu0 %v251
        %295 = vmatpush.msra.mxu0 %v249
        %296 = vmatmul.f32.gmra.mxu0 %v275
        %v297 = vpop.f32.mrf.mxu0
        %v298 = vadd.f32 %v266, %v297
        %299 = vmatmul.f32.gmra.mxu0 %v278
        %v300 = vpop.f32.mrf.mxu0
        %v301 = vadd.f32 %v271, %v300
        %302 = vdwg.mxu0
        %303 = vmatpush.msra.mxu0 0.0
        %304 = vmatpush.msra.mxu0 0.0
        %305 = vmatpush.msra.mxu0 0.0
        %306 = vmatpush.msra.mxu0 0.0
        %307 = vmatpush.msra.mxu0 0.0
        %308 = vmatpush.msra.mxu0 0.0
        %309 = vmatpush.msra.mxu0 0.0
        %310 = vmatpush.msra.mxu0 0.0
        %311 = vmatpush.msra.mxu0 0.0
        %312 = vmatpush.msra.mxu0 0.0
        %313 = vmatpush.msra.mxu0 %v260
        %314 = vmatpush.msra.mxu0 %v258
        %315 = vmatpush.msra.mxu0 %v256
        %316 = vmatpush.msra.mxu0 %v254
        %317 = vmatpush.msra.mxu0 %v252
        %318 = vmatpush.msra.mxu0 %v250
        %319 = vmatmul.f32.gmra.mxu0 %v275
        %v320 = vpop.f32.mrf.mxu0
        %v321 = vadd.f32 %v266, %v320
        %322 = vmatmul.f32.gmra.mxu0 %v278
        %v323 = vpop.f32.mrf.mxu0
        %v324 = vadd.f32 %v271, %v323
        %325 = vdwg.mxu0
        %326 = vst [vmem:[%s208] sm:$0xff] %v298
        %327 = vst [vmem:[%s208 + $0x8] sm:$0xff] %v321
        %328 = vst [vmem:[%s208 + $0x10] sm:$0xff] %v301
        %329 = vst [vmem:[%s208 + $0x18] sm:$0xff] %v324
        %s330 = sand.u32 %s112, 1
        %s331 = scalar_lea.sflag [#allocation5], %s330
        %s332 = sand.u32 %s112, 1
        %s333 = smul.addr %s332, 32
        %s334 = scalar_lea.vmem [#allocation6], %s333
        // Predicated region
        $region37: #{tpu_custom_call.1} parent=31 // pred_check
          %p335 = pneg %p122
        $region38: #{tpu_custom_call.1} parent=31 // pred_check_branch
          %337 = sbr.rel (%p335) target = $region40
        $region39: #{tpu_custom_call.1} parent=31 // pred_region
          %s338 = smul.u32 2, %s25
          %340 = vsyncadd %s331, 0
          %s341 = smul.addr %s24, 4
          %s342 = sadd.s32 %s338, %s341
          %s343 = smul.addr %s342, 8
          %s344 = scalar_lea.hbm %s3, %s343
          %s345 = sshll.u32 %s334, 4
          %s346 = int_to_ptr.vmem [resolvable:$true] %s345
          %s347 = sshll.u32 %s344, 4
          %s348 = int_to_ptr.hbm [resolvable:$true] %s347
          %353 = dma.vmem_to_hbm [thread:$0]  %s346, 512, %s348, %s331, 256, 256, 16
        $region40: #{tpu_custom_call.1} parent=31 // pred_fallthru
          _
      $region32: #{tpu_custom_call.1} parent=5 // pred_fallthru
        _
      %p354 = scmp.le.s32.totalorder 2, %s15
      // Predicated region
      $region41: #{tpu_custom_call.1} parent=5 // pred_check
        %p355 = pneg %p354
      $region42: #{tpu_custom_call.1} parent=5 // pred_check_branch
        %357 = sbr.rel (%p355) target = $region44
      $region43: #{tpu_custom_call.1} parent=5 // pred_region
        %s358 = ssub.s32 %s15, 2
        // Predicated region
        $region45: #{tpu_custom_call.1} parent=43 // pred_check
          %p359 = pneg %p128
        $region46: #{tpu_custom_call.1} parent=43 // pred_check_branch
          %361 = sbr.rel (%p359) target = $region48
        $region47: #{tpu_custom_call.1} parent=43 // pred_region
          %s362 = sand.u32 %s113, 1
          %s363 = scalar_lea.sflag [#allocation5], %s362
          %s364 = sand.u32 %s113, 1
          %s365 = smul.addr %s364, 32
          %s366 = scalar_lea.vmem [#allocation6], %s365
          %368 = dma.done %s363, 512
        $region48: #{tpu_custom_call.1} parent=43 // pred_fallthru
          _
      $region44: #{tpu_custom_call.1} parent=5 // pred_fallthru
        _
    $region6: #{tpu_custom_call.1} parent=1 // loop_footer
      %s19 = sadd.s32 1, %s15
    $region7: #{tpu_custom_call.1} parent=1 // loop_footer_branch
      %14 = sbr.rel target = $region3
    $region8: #{tpu_custom_call.1} parent=1 // loop_exit
      _
    %369 = vsyncpa [#allocation4], 1
    %s370 = scalar_lea.sflag [#allocation4], 1
    %371 = vsyncpa %s370, 1
    %372 = vsyncpa [#allocation5], 1
    %s373 = scalar_lea.sflag [#allocation5], 1
    %374 = vsyncpa %s373, 1

</llo_original>
